<compile_context>
chip_gen: v7x
topology: tpu7x:2x2x1
jax: 0.10.0
libtpu: 0.0.40
codegen_flags: <defaults>
</compile_context>

<pallas_src>
import functools
import math

import jax
import jax.numpy as jnp
import numpy as np
from jax import lax
from jax.experimental import pallas as pl
from jax.experimental.pallas import tpu as pltpu


def _mha_head_kernel(*refs, n_hidden, has_mask, return_alphas, compute_dtype):
    # refs: x (T,D), Wq (D,Nh), Wk (D,Nh), Wv (D,Nh), bq (1,Nh), bk (1,Nh),
    #       bv (1,Nh), Wo (Nh,D), bo (1,D), [mask (T,T) int8],
    #       out (T,D) f32 accumulator, [alpha (T,T)]
    (x_ref, wq_ref, wk_ref, wv_ref,
     bq_ref, bk_ref, bv_ref, wo_ref, bo_ref) = refs[:9]
    idx = 9
    mask_ref = None
    if has_mask:
        mask_ref = refs[idx]
        idx += 1
    out_ref = refs[idx]
    idx += 1
    alpha_ref = refs[idx] if return_alphas else None

    h = pl.program_id(1)
    scale = jnp.float32(1.0 / math.sqrt(n_hidden))

    x = x_ref[...]  # (T, D) in compute_dtype

    # Per-head projections: (T,D)@(D,Nh) -> (T,Nh), f32 accumulation + f32 bias.
    q = jnp.dot(x, wq_ref[...], preferred_element_type=jnp.float32) + bq_ref[...]
    k = jnp.dot(x, wk_ref[...], preferred_element_type=jnp.float32) + bk_ref[...]
    v = jnp.dot(x, wv_ref[...], preferred_element_type=jnp.float32) + bv_ref[...]

    # scores = Q @ K^T via dot_general contracting the last dims (no explicit
    # transpose); operands in compute_dtype, accumulation in f32.
    s = lax.dot_general(
        q.astype(compute_dtype), k.astype(compute_dtype),
        (((1,), (1,)), ((), ())),
        preferred_element_type=jnp.float32) * scale  # (T, T)

    if has_mask:
        # Finite large-negative fill instead of -inf: identical softmax for any
        # row with >=1 unmasked entry; fully-masked rows give a uniform row
        # instead of PyTorch's NaN (documented API-level divergence).
        s = jnp.where(mask_ref[...].astype(jnp.int32) == 0,
                      jnp.float32(-1e30), s)

    # Numerically stable softmax in f32; denominator reciprocal on the EUP.
    m = jnp.max(s, axis=-1, keepdims=True)
    e = jnp.exp(s - m)
    p = e * pl.reciprocal(jnp.sum(e, axis=-1, keepdims=True), approx=True)

    if return_alphas:
        alpha_ref[...] = p.astype(alpha_ref.dtype)  # per-head (T,T) store

    pv = jnp.dot(p.astype(compute_dtype), v.astype(compute_dtype),
                 preferred_element_type=jnp.float32)            # (T, Nh)
    head_out = jnp.dot(pv.astype(compute_dtype), wo_ref[...],
                       preferred_element_type=jnp.float32)      # (T, D)

    # Output block stays resident across the head axis: init with the output
    # bias at h == 0, then accumulate each head's projected contribution.
    @pl.when(h == 0)
    def _init():
        out_ref[...] = jnp.broadcast_to(bo_ref[...], out_ref.shape)

    out_ref[...] += head_out


def _vmem_limit_bytes(T, D, Nh, has_mask, return_alphas, cbytes, abytes):
    """Scoped-VMEM request sized from the actual blocks (with headroom)."""
    per_step = (
        T * D * cbytes            # x block
        + 3 * D * Nh * cbytes     # Wq / Wk / Wv blocks
        + 3 * Nh * 4              # bq / bk / bv
        + Nh * D * cbytes         # Wo block
        + D * 4                   # b_out
        + T * D * 4               # output accumulator block (f32)
    )
    if has_mask:
        per_step += T * T         # int8 mask, resident
    if return_alphas:
        per_step += T * T * abytes
    temporaries = 4 * T * T * 4 + 3 * T * Nh * 4 + T * D * 4
    est = 2 * per_step + temporaries        # double-buffered blocks + live temps
    return int(min(max(2 * est, 8 << 20), 100 << 20))


def multi_headed_attention(x, params, attn_mask=None, return_alphas=True,
                           compute_dtype=jnp.bfloat16, alpha_dtype=jnp.float32):
    """Pallas forward of MultiHeadedAttention.

    Returns (attn_output, attn_alphas) if return_alphas else attn_output.

    Semantics note: mask rows that are entirely zero produce a *uniform*
    softmax row (finite -1e30 fill) instead of PyTorch's NaN row.
    """
    B, T, D = x.shape
    H, _, Nh = params["wq"].shape
    assert params["w_out"].shape == (H * Nh, D)
    has_mask = attn_mask is not None

    cdt = jnp.dtype(compute_dtype)
    x_c = x.astype(cdt)
    wq = params["wq"].astype(cdt)                      # (H, D, Nh)
    wk = params["wk"].astype(cdt)
    wv = params["wv"].astype(cdt)
    wo = params["w_out"].reshape(H, Nh, D).astype(cdt)  # torch.cat head order
    bq, bk, bv, bo = params["bq"], params["bk"], params["bv"], params["b_out"]

    in_specs = [
        pl.BlockSpec((pl.Squeezed(), T, D), lambda b, h: (b, 0, 0)),    # x (resident across h)
        pl.BlockSpec((pl.Squeezed(), D, Nh), lambda b, h: (h, 0, 0)),   # Wq[h]
        pl.BlockSpec((pl.Squeezed(), D, Nh), lambda b, h: (h, 0, 0)),   # Wk[h]
        pl.BlockSpec((pl.Squeezed(), D, Nh), lambda b, h: (h, 0, 0)),   # Wv[h]
        pl.BlockSpec((pl.Squeezed(), 1, Nh), lambda b, h: (h, 0, 0)),   # bq[h]
        pl.BlockSpec((pl.Squeezed(), 1, Nh), lambda b, h: (h, 0, 0)),   # bk[h]
        pl.BlockSpec((pl.Squeezed(), 1, Nh), lambda b, h: (h, 0, 0)),   # bv[h]
        pl.BlockSpec((pl.Squeezed(), Nh, D), lambda b, h: (h, 0, 0)),   # W_out[h]
        pl.BlockSpec((1, D), lambda b, h: (0, 0)),                      # b_out (resident)
    ]
    args = [x_c, wq, wk, wv, bq, bk, bv, wo, bo]

    if has_mask:
        m = jnp.asarray(attn_mask)
        if m.ndim <= 2:
            # Single (T,T) int8 block, resident across the whole grid.
            args.append(jnp.broadcast_to(m, (T, T)).astype(jnp.int8))
            in_specs.append(pl.BlockSpec((T, T), lambda b, h: (0, 0)))
        else:
            # Per-batch mask: resident across the head axis only.
            args.append(jnp.broadcast_to(m, (B, T, T)).astype(jnp.int8))
            in_specs.append(
                pl.BlockSpec((pl.Squeezed(), T, T), lambda b, h: (b, 0, 0)))

    out_spec = pl.BlockSpec((pl.Squeezed(), T, D), lambda b, h: (b, 0, 0))
    out_shape = jax.ShapeDtypeStruct((B, T, D), jnp.float32)
    if return_alphas:
        out_shape = (out_shape,
                     jax.ShapeDtypeStruct((B, H, T, T), jnp.dtype(alpha_dtype)))
        out_specs = (out_spec,
                     pl.BlockSpec((pl.Squeezed(), pl.Squeezed(), T, T),
                                  lambda b, h: (b, h, 0, 0)))
    else:
        out_specs = out_spec

    kernel = functools.partial(
        _mha_head_kernel,
        n_hidden=Nh,
        has_mask=has_mask,
        return_alphas=return_alphas,
        compute_dtype=cdt,
    )

    vmem_limit = _vmem_limit_bytes(
        T, D, Nh, has_mask, return_alphas,
        cdt.itemsize, jnp.dtype(alpha_dtype).itemsize)

    return pl.pallas_call(
        kernel,
        out_shape=out_shape,
        grid=(B, H),
        in_specs=in_specs,
        out_specs=out_specs,
        compiler_params=pltpu.CompilerParams(
            dimension_semantics=("parallel", "arbitrary"),
            vmem_limit_bytes=vmem_limit),
    )(*args)


def init_params(key, dim, n_hidden, num_heads):
    """Deterministic synthetic parameters (shapes mirror the nn.Module)."""
    ks = jax.random.split(key, 8)
    s = 1.0 / math.sqrt(dim)
    so = 1.0 / math.sqrt(num_heads * n_hidden)
    return {
        # nn.Linear(dim, n_hidden).weight is [n_hidden, dim]; stored transposed.
        "wq": jax.random.uniform(ks[0], (num_heads, dim, n_hidden), jnp.float32, -s, s),
        "wk": jax.random.uniform(ks[1], (num_heads, dim, n_hidden), jnp.float32, -s, s),
        "wv": jax.random.uniform(ks[2], (num_heads, dim, n_hidden), jnp.float32, -s, s),
        "bq": jax.random.uniform(ks[3], (num_heads, 1, n_hidden), jnp.float32, -s, s),
        "bk": jax.random.uniform(ks[4], (num_heads, 1, n_hidden), jnp.float32, -s, s),
        "bv": jax.random.uniform(ks[5], (num_heads, 1, n_hidden), jnp.float32, -s, s),
        # nn.Linear(num_heads*n_hidden, dim).weight is [dim, H*Nh]; stored transposed.
        "w_out": jax.random.uniform(ks[6], (num_heads * n_hidden, dim), jnp.float32, -so, so),
        "b_out": jax.random.uniform(ks[7], (1, dim), jnp.float32, -so, so),
    }


def _reference(x, params, attn_mask=None):
    """Pure-JAX f32 reference mirroring the PyTorch forward."""
    H = params["wq"].shape[0]
    Nh = params["wq"].shape[2]
    outs, alphas = [], []
    for h in range(H):
        q = x @ params["wq"][h] + params["bq"][h]
        k = x @ params["wk"][h] + params["bk"][h]
        v = x @ params["wv"][h] + params["bv"][h]
        a = jnp.einsum("btn,bsn->bts", q, k) / (Nh ** 0.5)
        if attn_mask is not None:
            a = jnp.where(attn_mask == 0, -jnp.inf, a)
        a = jax.nn.softmax(a, axis=-1)
        outs.append(jnp.einsum("bts,bsn->btn", a, v))
        alphas.append(a)
    out = jnp.concatenate(outs, axis=-1) @ params["w_out"] + params["b_out"]
    return out, jnp.stack(alphas, axis=1)


if __name__ == "__main__":
    B, T, D = 2, 8, 32          # batch, seq, dim
    n_hidden, num_heads = 16, 4

    key = jax.random.PRNGKey(0)
    k_x, k_p = jax.random.split(key)
    x = jax.random.normal(k_x, (B, T, D), jnp.float32)
    params = init_params(k_p, D, n_hidden, num_heads)

    ref_out, ref_alphas = _reference(x, params, attn_mask=None)

    # f32 compute path (only deviation: approximate EUP reciprocal in softmax).
    out32, a32 = multi_headed_attention(x, params, attn_mask=None,
                                        compute_dtype=jnp.float32)
    out32 = jax.block_until_ready(out32)
    a32 = jax.block_until_ready(a32)
    np.testing.assert_allclose(np.asarray(out32), np.asarray(ref_out),
                               rtol=2e-2, atol=2e-2)
    np.testing.assert_allclose(np.asarray(a32), np.asarray(ref_alphas),
                               rtol=2e-2, atol=2e-2)
    assert out32.shape == (B, T, D)
    assert a32.shape == (B, num_heads, T, T)

    # Default bf16-matmul path (f32 softmax / accumulation), looser tolerance.
    out_bf, a_bf = multi_headed_attention(x, params, attn_mask=None)
    out_bf = jax.block_until_ready(out_bf)
    np.testing.assert_allclose(np.asarray(out_bf), np.asarray(ref_out),
                               rtol=6e-2, atol=6e-2)
    np.testing.assert_allclose(np.asarray(a_bf), np.asarray(ref_alphas),
                               rtol=6e-2, atol=6e-2)

    # Masked path (causal: no fully-masked rows, so finite-neg fill matches the
    # -inf reference).
    causal = jnp.tril(jnp.ones((T, T), jnp.int32))
    ref_m_out, ref_m_alphas = _reference(x, params, attn_mask=causal)
    m_out, m_alphas = multi_headed_attention(x, params, attn_mask=causal)
    m_out = jax.block_until_ready(m_out)
    np.testing.assert_allclose(np.asarray(m_out), np.asarray(ref_m_out),
                               rtol=6e-2, atol=6e-2)
    np.testing.assert_allclose(np.asarray(m_alphas), np.asarray(ref_m_alphas),
                               rtol=6e-2, atol=6e-2)

    # Alphas can be skipped entirely (no (B,H,T,T) writeback).
    out_only = multi_headed_attention(x, params, attn_mask=None,
                                      return_alphas=False)
    out_only = jax.block_until_ready(out_only)
    np.testing.assert_allclose(np.asarray(out_only), np.asarray(ref_out),
                               rtol=6e-2, atol=6e-2)

    print("KERNEL_OK")
</pallas_src>

<mosaic_0001>
module attributes {stable_mosaic.version = 11 : i64} {
  func.func @_mha_head_kernel(%arg0: i32, %arg1: i32, %arg2: memref<1x8x32xf32, #tpu.memory_space<vmem>>, %arg3: memref<1x32x16xf32, #tpu.memory_space<vmem>>, %arg4: memref<1x32x16xf32, #tpu.memory_space<vmem>>, %arg5: memref<1x32x16xf32, #tpu.memory_space<vmem>>, %arg6: memref<1x1x16xf32, #tpu.memory_space<vmem>>, %arg7: memref<1x1x16xf32, #tpu.memory_space<vmem>>, %arg8: memref<1x1x16xf32, #tpu.memory_space<vmem>>, %arg9: memref<1x16x32xf32, #tpu.memory_space<vmem>>, %arg10: memref<1x32xf32, #tpu.memory_space<vmem>>, %arg11: memref<1x8x32xf32, #tpu.memory_space<vmem>>, %arg12: memref<1x1x8x8xf32, #tpu.memory_space<vmem>>) attributes {dimension_semantics = [#tpu.dimension_semantics<parallel>, #tpu.dimension_semantics<arbitrary>], iteration_bounds = array<i64: 2, 4>, scalar_prefetch = 0 : i64, scratch_operands = 0 : i64, tpu.core_type = #tpu.core_type<tc>, window_params = [{transform_indices = @transform_0, window_bounds = array<i64: 1, 8, 32>}, {transform_indices = @transform_1, window_bounds = array<i64: 1, 32, 16>}, {transform_indices = @transform_2, window_bounds = array<i64: 1, 32, 16>}, {transform_indices = @transform_3, window_bounds = array<i64: 1, 32, 16>}, {transform_indices = @transform_4, window_bounds = array<i64: 1, 1, 16>}, {transform_indices = @transform_5, window_bounds = array<i64: 1, 1, 16>}, {transform_indices = @transform_6, window_bounds = array<i64: 1, 1, 16>}, {transform_indices = @transform_7, window_bounds = array<i64: 1, 16, 32>}, {pipeline_mode = #tpu.pipeline_mode<synchronous>, transform_indices = @transform_8, window_bounds = array<i64: 1, 32>}, {transform_indices = @transform_9, window_bounds = array<i64: 1, 8, 32>}, {transform_indices = @transform_10, window_bounds = array<i64: 1, 1, 8, 8>}]} {
    %c0 = arith.constant 0 : index
    %c0_0 = arith.constant 0 : index
    %c0_1 = arith.constant 0 : index
    %0 = vector.load %arg2[%c0, %c0_0, %c0_1] : memref<1x8x32xf32, #tpu.memory_space<vmem>>, vector<1x8x32xf32>
    %1 = vector.shape_cast %0 : vector<1x8x32xf32> to vector<8x32xf32>
    %c0_2 = arith.constant 0 : index
    %c0_3 = arith.constant 0 : index
    %c0_4 = arith.constant 0 : index
    %2 = vector.load %arg3[%c0_2, %c0_3, %c0_4] : memref<1x32x16xf32, #tpu.memory_space<vmem>>, vector<1x32x16xf32>
    %3 = vector.shape_cast %2 : vector<1x32x16xf32> to vector<32x16xf32>
    %cst = arith.constant dense<0.000000e+00> : vector<8x16xf32>
    %4 = tpu.matmul %1, %3, %cst {dimension_numbers = #tpu.dot_dimension_numbers<[1], [0], [0], [1], [0, 0, 1, 1], [], []>} : vector<8x32xf32>, vector<32x16xf32>, vector<8x16xf32> -> vector<8x16xf32>
    %c0_5 = arith.constant 0 : index
    %c0_6 = arith.constant 0 : index
    %c0_7 = arith.constant 0 : index
    %5 = vector.load %arg6[%c0_5, %c0_6, %c0_7] : memref<1x1x16xf32, #tpu.memory_space<vmem>>, vector<1x1x16xf32>
    %6 = vector.shape_cast %5 : vector<1x1x16xf32> to vector<1x16xf32>
    %7 = vector.broadcast %6 : vector<1x16xf32> to vector<8x16xf32>
    %8 = arith.addf %4, %7 : vector<8x16xf32>
    %c0_8 = arith.constant 0 : index
    %c0_9 = arith.constant 0 : index
    %c0_10 = arith.constant 0 : index
    %9 = vector.load %arg4[%c0_8, %c0_9, %c0_10] : memref<1x32x16xf32, #tpu.memory_space<vmem>>, vector<1x32x16xf32>
    %10 = vector.shape_cast %9 : vector<1x32x16xf32> to vector<32x16xf32>
    %cst_11 = arith.constant dense<0.000000e+00> : vector<8x16xf32>
    %11 = tpu.matmul %1, %10, %cst_11 {dimension_numbers = #tpu.dot_dimension_numbers<[1], [0], [0], [1], [0, 0, 1, 1], [], []>} : vector<8x32xf32>, vector<32x16xf32>, vector<8x16xf32> -> vector<8x16xf32>
    %c0_12 = arith.constant 0 : index
    %c0_13 = arith.constant 0 : index
    %c0_14 = arith.constant 0 : index
    %12 = vector.load %arg7[%c0_12, %c0_13, %c0_14] : memref<1x1x16xf32, #tpu.memory_space<vmem>>, vector<1x1x16xf32>
    %13 = vector.shape_cast %12 : vector<1x1x16xf32> to vector<1x16xf32>
    %14 = vector.broadcast %13 : vector<1x16xf32> to vector<8x16xf32>
    %15 = arith.addf %11, %14 : vector<8x16xf32>
    %c0_15 = arith.constant 0 : index
    %c0_16 = arith.constant 0 : index
    %c0_17 = arith.constant 0 : index
    %16 = vector.load %arg5[%c0_15, %c0_16, %c0_17] : memref<1x32x16xf32, #tpu.memory_space<vmem>>, vector<1x32x16xf32>
    %17 = vector.shape_cast %16 : vector<1x32x16xf32> to vector<32x16xf32>
    %cst_18 = arith.constant dense<0.000000e+00> : vector<8x16xf32>
    %18 = tpu.matmul %1, %17, %cst_18 {dimension_numbers = #tpu.dot_dimension_numbers<[1], [0], [0], [1], [0, 0, 1, 1], [], []>} : vector<8x32xf32>, vector<32x16xf32>, vector<8x16xf32> -> vector<8x16xf32>
    %c0_19 = arith.constant 0 : index
    %c0_20 = arith.constant 0 : index
    %c0_21 = arith.constant 0 : index
    %19 = vector.load %arg8[%c0_19, %c0_20, %c0_21] : memref<1x1x16xf32, #tpu.memory_space<vmem>>, vector<1x1x16xf32>
    %20 = vector.shape_cast %19 : vector<1x1x16xf32> to vector<1x16xf32>
    %21 = vector.broadcast %20 : vector<1x16xf32> to vector<8x16xf32>
    %22 = arith.addf %18, %21 : vector<8x16xf32>
    %cst_22 = arith.constant dense<0.000000e+00> : vector<8x8xf32>
    %23 = tpu.matmul %8, %15, %cst_22 {dimension_numbers = #tpu.dot_dimension_numbers<[1], [1], [0], [0], [0, 0, 1, 0], [], []>} : vector<8x16xf32>, vector<8x16xf32>, vector<8x8xf32> -> vector<8x8xf32>
    %cst_23 = arith.constant 2.500000e-01 : f32
    %24 = vector.broadcast %cst_23 : f32 to vector<8x8xf32>
    %25 = arith.mulf %23, %24 : vector<8x8xf32>
    %cst_24 = arith.constant dense<0xFF800000> : vector<8xf32>
    %26 = vector.multi_reduction <maximumf>, %25, %cst_24 [1] : vector<8x8xf32> to vector<8xf32>
    %27 = vector.shape_cast %26 : vector<8xf32> to vector<8x1xf32>
    %28 = vector.broadcast %27 : vector<8x1xf32> to vector<8x8xf32>
    %29 = arith.subf %25, %28 : vector<8x8xf32>
    %30 = math.exp %29 : vector<8x8xf32>
    %cst_25 = arith.constant dense<0.000000e+00> : vector<8xf32>
    %31 = vector.multi_reduction <add>, %30, %cst_25 [1] : vector<8x8xf32> to vector<8xf32>
    %32 = vector.shape_cast %31 : vector<8xf32> to vector<8x1xf32>
    %33 = tpu.reciprocal %32 {approx = true} : vector<8x1xf32> -> vector<8x1xf32>
    %34 = vector.broadcast %33 : vector<8x1xf32> to vector<8x8xf32>
    %35 = arith.mulf %30, %34 : vector<8x8xf32>
    %c0_26 = arith.constant 0 : index
    %c0_27 = arith.constant 0 : index
    %c0_28 = arith.constant 0 : index
    %c0_29 = arith.constant 0 : index
    %36 = vector.load %arg12[%c0_26, %c0_27, %c0_28, %c0_29] : memref<1x1x8x8xf32, #tpu.memory_space<vmem>>, vector<1x1x8x8xf32>
    %37 = vector.shape_cast %36 : vector<1x1x8x8xf32> to vector<8x8xf32>
    %38 = vector.shape_cast %35 : vector<8x8xf32> to vector<1x1x8x8xf32>
    tpu.vector_store %arg12[%c0_26, %c0_27, %c0_28, %c0_29], %38 {strides = array<i32>} : memref<1x1x8x8xf32, #tpu.memory_space<vmem>>, vector<1x1x8x8xf32>,
    %cst_30 = arith.constant dense<0.000000e+00> : vector<8x16xf32>
    %39 = tpu.matmul %35, %22, %cst_30 {dimension_numbers = #tpu.dot_dimension_numbers<[1], [0], [0], [1], [0, 0, 1, 1], [], []>} : vector<8x8xf32>, vector<8x16xf32>, vector<8x16xf32> -> vector<8x16xf32>
    %c0_31 = arith.constant 0 : index
    %c0_32 = arith.constant 0 : index
    %c0_33 = arith.constant 0 : index
    %40 = vector.load %arg9[%c0_31, %c0_32, %c0_33] : memref<1x16x32xf32, #tpu.memory_space<vmem>>, vector<1x16x32xf32>
    %41 = vector.shape_cast %40 : vector<1x16x32xf32> to vector<16x32xf32>
    %cst_34 = arith.constant dense<0.000000e+00> : vector<8x32xf32>
    %42 = tpu.matmul %39, %41, %cst_34 {dimension_numbers = #tpu.dot_dimension_numbers<[1], [0], [0], [1], [0, 0, 1, 1], [], []>} : vector<8x16xf32>, vector<16x32xf32>, vector<8x32xf32> -> vector<8x32xf32>
    %c0_i32 = arith.constant 0 : i32
    %43 = arith.cmpi eq, %arg1, %c0_i32 : i32
    %44 = arith.extui %43 : i1 to i32
    %c0_i32_35 = arith.constant 0 : i32
    %45 = arith.cmpi ne, %44, %c0_i32_35 : i32
    scf.if %45 {
      %c0_42 = arith.constant 0 : index
      %c0_43 = arith.constant 0 : index
      %52 = vector.load %arg10[%c0_42, %c0_43] : memref<1x32xf32, #tpu.memory_space<vmem>>, vector<1x32xf32>
      %53 = vector.shape_cast %52 : vector<1x32xf32> to vector<1x32xf32>
      %54 = vector.broadcast %53 : vector<1x32xf32> to vector<8x32xf32>
      %c0_44 = arith.constant 0 : index
      %c0_45 = arith.constant 0 : index
      %c0_46 = arith.constant 0 : index
      %55 = vector.load %arg11[%c0_44, %c0_45, %c0_46] : memref<1x8x32xf32, #tpu.memory_space<vmem>>, vector<1x8x32xf32>
      %56 = vector.shape_cast %55 : vector<1x8x32xf32> to vector<8x32xf32>
      %57 = vector.shape_cast %54 : vector<8x32xf32> to vector<1x8x32xf32>
      tpu.vector_store %arg11[%c0_44, %c0_45, %c0_46], %57 {strides = array<i32>} : memref<1x8x32xf32, #tpu.memory_space<vmem>>, vector<1x8x32xf32>,
    } else {
    }
    %c0_36 = arith.constant 0 : index
    %c0_37 = arith.constant 0 : index
    %c0_38 = arith.constant 0 : index
    %46 = vector.load %arg11[%c0_36, %c0_37, %c0_38] : memref<1x8x32xf32, #tpu.memory_space<vmem>>, vector<1x8x32xf32>
    %47 = vector.shape_cast %46 : vector<1x8x32xf32> to vector<8x32xf32>
    %48 = arith.addf %47, %42 : vector<8x32xf32>
    %c0_39 = arith.constant 0 : index
    %c0_40 = arith.constant 0 : index
    %c0_41 = arith.constant 0 : index
    %49 = vector.load %arg11[%c0_39, %c0_40, %c0_41] : memref<1x8x32xf32, #tpu.memory_space<vmem>>, vector<1x8x32xf32>
    %50 = vector.shape_cast %49 : vector<1x8x32xf32> to vector<8x32xf32>
    %51 = vector.shape_cast %48 : vector<8x32xf32> to vector<1x8x32xf32>
    tpu.vector_store %arg11[%c0_39, %c0_40, %c0_41], %51 {strides = array<i32>} : memref<1x8x32xf32, #tpu.memory_space<vmem>>, vector<1x8x32xf32>,
    return
  }
  func.func @transform_0(%arg0: i32, %arg1: i32) -> (i32, i32, i32) {
    %c0_i32 = arith.constant 0 : i32
    %c0_i32_0 = arith.constant 0 : i32
    %c0_i32_1 = arith.constant 0 : i32
    return %arg0, %c0_i32, %c0_i32_0 : i32, i32, i32
  }
  func.func @transform_1(%arg0: i32, %arg1: i32) -> (i32, i32, i32) {
    %c0_i32 = arith.constant 0 : i32
    %c0_i32_0 = arith.constant 0 : i32
    %c0_i32_1 = arith.constant 0 : i32
    return %arg1, %c0_i32, %c0_i32_0 : i32, i32, i32
  }
  func.func @transform_2(%arg0: i32, %arg1: i32) -> (i32, i32, i32) {
    %c0_i32 = arith.constant 0 : i32
    %c0_i32_0 = arith.constant 0 : i32
    %c0_i32_1 = arith.constant 0 : i32
    return %arg1, %c0_i32, %c0_i32_0 : i32, i32, i32
  }
  func.func @transform_3(%arg0: i32, %arg1: i32) -> (i32, i32, i32) {
    %c0_i32 = arith.constant 0 : i32
    %c0_i32_0 = arith.constant 0 : i32
    %c0_i32_1 = arith.constant 0 : i32
    return %arg1, %c0_i32, %c0_i32_0 : i32, i32, i32
  }
  func.func @transform_4(%arg0: i32, %arg1: i32) -> (i32, i32, i32) {
    %c0_i32 = arith.constant 0 : i32
    %c0_i32_0 = arith.constant 0 : i32
    %c0_i32_1 = arith.constant 0 : i32
    return %arg1, %c0_i32, %c0_i32_0 : i32, i32, i32
  }
  func.func @transform_5(%arg0: i32, %arg1: i32) -> (i32, i32, i32) {
    %c0_i32 = arith.constant 0 : i32
    %c0_i32_0 = arith.constant 0 : i32
    %c0_i32_1 = arith.constant 0 : i32
    return %arg1, %c0_i32, %c0_i32_0 : i32, i32, i32
  }
  func.func @transform_6(%arg0: i32, %arg1: i32) -> (i32, i32, i32) {
    %c0_i32 = arith.constant 0 : i32
    %c0_i32_0 = arith.constant 0 : i32
    %c0_i32_1 = arith.constant 0 : i32
    return %arg1, %c0_i32, %c0_i32_0 : i32, i32, i32
  }
  func.func @transform_7(%arg0: i32, %arg1: i32) -> (i32, i32, i32) {
    %c0_i32 = arith.constant 0 : i32
    %c0_i32_0 = arith.constant 0 : i32
    %c0_i32_1 = arith.constant 0 : i32
    return %arg1, %c0_i32, %c0_i32_0 : i32, i32, i32
  }
  func.func @transform_8(%arg0: i32, %arg1: i32) -> (i32, i32) {
    %c0_i32 = arith.constant 0 : i32
    %c0_i32_0 = arith.constant 0 : i32
    %c0_i32_1 = arith.constant 0 : i32
    return %c0_i32, %c0_i32_0 : i32, i32
  }
  func.func @transform_9(%arg0: i32, %arg1: i32) -> (i32, i32, i32) {
    %c0_i32 = arith.constant 0 : i32
    %c0_i32_0 = arith.constant 0 : i32
    %c0_i32_1 = arith.constant 0 : i32
    return %arg0, %c0_i32, %c0_i32_0 : i32, i32, i32
  }
  func.func @transform_10(%arg0: i32, %arg1: i32) -> (i32, i32, i32, i32) {
    %c0_i32 = arith.constant 0 : i32
    %c0_i32_0 = arith.constant 0 : i32
    %c0_i32_1 = arith.constant 0 : i32
    return %arg0, %arg1, %c0_i32, %c0_i32_0 : i32, i32, i32, i32
  }
}

</mosaic_0001>

<llo_original>
// kernel: tpu_custom_call.1
$region0: #{tpu_custom_call.1}
  #allocation0 [shape = 'u32[]', space=smem, size = 0x4, offset = 0x4, fixed_abs, tag = 'smem constant byte address 0x4 - core index']
  #allocation1 [shape = 'u32[144,128]{1,0:T(1,128)}', space=vmem, size = 0x12000, scoped, tag = 'internal scratch']
  %s0 = inlined_call_operand.vmem [shape: f32[2,8,32], index: 0, kind: input, shape index: {}]
  %s1 = inlined_call_operand.vmem [shape: f32[4,32,16], index: 1, kind: input, shape index: {}]
  %s2 = inlined_call_operand.vmem [shape: f32[4,32,16], index: 2, kind: input, shape index: {}]
  %s3 = inlined_call_operand.vmem [shape: f32[4,32,16], index: 3, kind: input, shape index: {}]
  %s4 = inlined_call_operand.vmem [shape: f32[4,1,16], index: 4, kind: input, shape index: {}]
  %s5 = inlined_call_operand.vmem [shape: f32[4,1,16], index: 5, kind: input, shape index: {}]
  %s6 = inlined_call_operand.vmem [shape: f32[4,1,16], index: 6, kind: input, shape index: {}]
  %s7 = inlined_call_operand.vmem [shape: f32[4,16,32], index: 7, kind: input, shape index: {}]
  %s8 = inlined_call_operand.vmem [shape: f32[1,32], index: 8, kind: input, shape index: {}]
  %s9 = inlined_call_operand.hbm [shape: f32[2,8,32], index: 9, kind: output, shape index: {0}]
  %s10 = inlined_call_operand.hbm [shape: f32[2,4,8,8], index: 10, kind: output, shape index: {1}]
  %11 = xla_tuple %s9, %s10
  %s12 = sld [smem:[#allocation0]]
  $region81: #{tpu_custom_call.1} parent=0
    _
  %s14 = ssub.s32 1, %s12
  %s15 = scalar_select 0, %s14, %s12
  $region1: #{tpu_custom_call.1} parent=0
    #allocation2 [shape = 'u8[8192]{0}', space=vmem, size = 0x2000, scoped, tag = 'output window, operand 0']
    #allocation3 [shape = 's32[2]{0}', space=sflag, size = 0x8, scoped, tag = 'scoped memory for tpu_custom_call.1']
    #allocation4 [shape = 'u8[8192]{0}', space=vmem, size = 0x2000, scoped, tag = 'output window, operand 1']
    #allocation5 [shape = 's32[2]{0}', space=sflag, size = 0x8, scoped, tag = 'scoped memory for tpu_custom_call.1']
    %16 = vsyncpa [#allocation3], 0
    %s17 = scalar_lea.sflag [#allocation3], 1
    %18 = vsyncpa %s17, 0
    %19 = vsyncpa [#allocation5], 0
    %s20 = scalar_lea.sflag [#allocation5], 1
    %21 = vsyncpa %s20, 0
    loop: start=0, step=1, limit=10
    $region2: #{tpu_custom_call.1} parent=1 // loop_pre_header
      _
    $region3: #{tpu_custom_call.1} parent=1 // loop_header
      %s23 = sphi 0, %s27
      %p24 = scmp.ge.s32.totalorder %s23, 10
      %s30 = sphi 0, %s42
      %s31 = sphi 0, %s38
      %s32 = sphi 0, %s30
      %s33 = sphi 0, %s31
      %s34 = sphi 0, %s32
      %s35 = sphi 0, %s33
      %s45 = sphi 0, %s47
      %s48 = sphi 0, %s45
      %s49 = sphi 0, %s48
      %s65 = sphi 0, %s49
      %s71 = sphi 0, %s73
      %s74 = sphi 0, %s71
      %s75 = sphi 0, %s74
      %s91 = sphi 0, %s75
      %s97 = sphi 0, %s99
      %s100 = sphi 0, %s97
      %s101 = sphi 0, %s100
      %s117 = sphi 0, %s101
      %s123 = sphi 0, %s125
      %s126 = sphi 0, %s123
      %s127 = sphi 0, %s126
      %s143 = sphi 0, %s127
      %s149 = sphi 0, %s151
      %s152 = sphi 0, %s149
      %s153 = sphi 0, %s152
      %s169 = sphi 0, %s153
      %s175 = sphi 0, %s177
      %s178 = sphi 0, %s175
      %s179 = sphi 0, %s178
      %s195 = sphi 0, %s179
      %s201 = sphi 0, %s203
      %s204 = sphi 0, %s201
      %s205 = sphi 0, %s204
      %s221 = sphi 0, %s205
      %s227 = sphi 0, %s229
      %s230 = sphi 0, %s227
      %s231 = sphi 0, %s230
      %s247 = sphi 0, %s231
      %s251 = sphi 0, %s251
      %s253 = sphi 0, %s251
      %s254 = sphi 0, %s253
      %s268 = sphi 0, %s254
      %s274 = sphi 0, %s276
      %s277 = sphi 0, %s274
      %s278 = sphi 0, %s277
      %s294 = sphi 0, %s278
      %s302 = sphi 0, %s304
      %s305 = sphi 0, %s302
      %s306 = sphi 0, %s305
      %s322 = sphi 0, %s306
    $region4: #{tpu_custom_call.1} parent=1 // loop_header_branch
      %26 = sbr.rel (%p24) target = $region8
    $region5: #{tpu_custom_call.1} parent=1 // loop_body
      %s28 = ssub.s32 %s23, 1
      %s29 = ssub.s32 %s23, 2
      %s36 = sadd.s32 1, %s31
      %p37 = scmp.ge.s32.totalorder %s36, 4
      %s38 = scalar_select %p37, 0, %s36
      %s39 = sadd.s32 1, %s30
      %s40 = scalar_select %p37, %s39, %s30
      %p41 = scmp.ge.s32.totalorder %s40, 2
      %s42 = scalar_select %p41, 0, %s40
      %s43 = ssub.s32 %s30, %s42
      %p44 = scmp.eq.s32.totalorder %s43, 0
      %s46 = sadd.s32 %s45, 1
      %s47 = scalar_select %p44, %s45, %s46
      %p50 = pneg %p44
      %p51 = scmp.eq.s32.totalorder %s23, 7
      %p52 = por %p50, %p51
      %p53 = scmp.ne.s32.totalorder %s45, %s48
      %p54 = scmp.eq.s32.totalorder %s23, 0
      %p55 = por %p53, %p54
      %p56 = scmp.ne.s32.totalorder %s45, %s48
      %p57 = scmp.eq.s32.totalorder %s28, 7
      %p58 = por %p56, %p57
      %p59 = scmp.ne.s32.totalorder %s48, %s49
      %p60 = scmp.eq.s32.totalorder %s28, 0
      %p61 = por %p59, %p60
      %p62 = scmp.ne.s32.totalorder %s48, %s49
      %p63 = scmp.eq.s32.totalorder %s29, 7
      %p64 = por %p62, %p63
      %p66 = scmp.ne.s32.totalorder %s49, %s65
      %p67 = scmp.eq.s32.totalorder %s29, 0
      %p68 = por %p66, %p67
      %s69 = ssub.s32 %s31, %s38
      %p70 = scmp.eq.s32.totalorder %s69, 0
      %s72 = sadd.s32 %s71, 1
      %s73 = scalar_select %p70, %s71, %s72
      %p76 = pneg %p70
      %p77 = scmp.eq.s32.totalorder %s23, 7
      %p78 = por %p76, %p77
      %p79 = scmp.ne.s32.totalorder %s71, %s74
      %p80 = scmp.eq.s32.totalorder %s23, 0
      %p81 = por %p79, %p80
      %p82 = scmp.ne.s32.totalorder %s71, %s74
      %p83 = scmp.eq.s32.totalorder %s28, 7
      %p84 = por %p82, %p83
      %p85 = scmp.ne.s32.totalorder %s74, %s75
      %p86 = scmp.eq.s32.totalorder %s28, 0
      %p87 = por %p85, %p86
      %p88 = scmp.ne.s32.totalorder %s74, %s75
      %p89 = scmp.eq.s32.totalorder %s29, 7
      %p90 = por %p88, %p89
      %p92 = scmp.ne.s32.totalorder %s75, %s91
      %p93 = scmp.eq.s32.totalorder %s29, 0
      %p94 = por %p92, %p93
      %s95 = ssub.s32 %s31, %s38
      %p96 = scmp.eq.s32.totalorder %s95, 0
      %s98 = sadd.s32 %s97, 1
      %s99 = scalar_select %p96, %s97, %s98
      %p102 = pneg %p96
      %p103 = scmp.eq.s32.totalorder %s23, 7
      %p104 = por %p102, %p103
      %p105 = scmp.ne.s32.totalorder %s97, %s100
      %p106 = scmp.eq.s32.totalorder %s23, 0
      %p107 = por %p105, %p106
      %p108 = scmp.ne.s32.totalorder %s97, %s100
      %p109 = scmp.eq.s32.totalorder %s28, 7
      %p110 = por %p108, %p109
      %p111 = scmp.ne.s32.totalorder %s100, %s101
      %p112 = scmp.eq.s32.totalorder %s28, 0
      %p113 = por %p111, %p112
      %p114 = scmp.ne.s32.totalorder %s100, %s101
      %p115 = scmp.eq.s32.totalorder %s29, 7
      %p116 = por %p114, %p115
      %p118 = scmp.ne.s32.totalorder %s101, %s117
      %p119 = scmp.eq.s32.totalorder %s29, 0
      %p120 = por %p118, %p119
      %s121 = ssub.s32 %s31, %s38
      %p122 = scmp.eq.s32.totalorder %s121, 0
      %s124 = sadd.s32 %s123, 1
      %s125 = scalar_select %p122, %s123, %s124
      %p128 = pneg %p122
      %p129 = scmp.eq.s32.totalorder %s23, 7
      %p130 = por %p128, %p129
      %p131 = scmp.ne.s32.totalorder %s123, %s126
      %p132 = scmp.eq.s32.totalorder %s23, 0
      %p133 = por %p131, %p132
      %p134 = scmp.ne.s32.totalorder %s123, %s126
      %p135 = scmp.eq.s32.totalorder %s28, 7
      %p136 = por %p134, %p135
      %p137 = scmp.ne.s32.totalorder %s126, %s127
      %p138 = scmp.eq.s32.totalorder %s28, 0
      %p139 = por %p137, %p138
      %p140 = scmp.ne.s32.totalorder %s126, %s127
      %p141 = scmp.eq.s32.totalorder %s29, 7
      %p142 = por %p140, %p141
      %p144 = scmp.ne.s32.totalorder %s127, %s143
      %p145 = scmp.eq.s32.totalorder %s29, 0
      %p146 = por %p144, %p145
      %s147 = ssub.s32 %s31, %s38
      %p148 = scmp.eq.s32.totalorder %s147, 0
      %s150 = sadd.s32 %s149, 1
      %s151 = scalar_select %p148, %s149, %s150
      %p154 = pneg %p148
      %p155 = scmp.eq.s32.totalorder %s23, 7
      %p156 = por %p154, %p155
      %p157 = scmp.ne.s32.totalorder %s149, %s152
      %p158 = scmp.eq.s32.totalorder %s23, 0
      %p159 = por %p157, %p158
      %p160 = scmp.ne.s32.totalorder %s149, %s152
      %p161 = scmp.eq.s32.totalorder %s28, 7
      %p162 = por %p160, %p161
      %p163 = scmp.ne.s32.totalorder %s152, %s153
      %p164 = scmp.eq.s32.totalorder %s28, 0
      %p165 = por %p163, %p164
      %p166 = scmp.ne.s32.totalorder %s152, %s153
      %p167 = scmp.eq.s32.totalorder %s29, 7
      %p168 = por %p166, %p167
      %p170 = scmp.ne.s32.totalorder %s153, %s169
      %p171 = scmp.eq.s32.totalorder %s29, 0
      %p172 = por %p170, %p171
      %s173 = ssub.s32 %s31, %s38
      %p174 = scmp.eq.s32.totalorder %s173, 0
      %s176 = sadd.s32 %s175, 1
      %s177 = scalar_select %p174, %s175, %s176
      %p180 = pneg %p174
      %p181 = scmp.eq.s32.totalorder %s23, 7
      %p182 = por %p180, %p181
      %p183 = scmp.ne.s32.totalorder %s175, %s178
      %p184 = scmp.eq.s32.totalorder %s23, 0
      %p185 = por %p183, %p184
      %p186 = scmp.ne.s32.totalorder %s175, %s178
      %p187 = scmp.eq.s32.totalorder %s28, 7
      %p188 = por %p186, %p187
      %p189 = scmp.ne.s32.totalorder %s178, %s179
      %p190 = scmp.eq.s32.totalorder %s28, 0
      %p191 = por %p189, %p190
      %p192 = scmp.ne.s32.totalorder %s178, %s179
      %p193 = scmp.eq.s32.totalorder %s29, 7
      %p194 = por %p192, %p193
      %p196 = scmp.ne.s32.totalorder %s179, %s195
      %p197 = scmp.eq.s32.totalorder %s29, 0
      %p198 = por %p196, %p197
      %s199 = ssub.s32 %s31, %s38
      %p200 = scmp.eq.s32.totalorder %s199, 0
      %s202 = sadd.s32 %s201, 1
      %s203 = scalar_select %p200, %s201, %s202
      %p206 = pneg %p200
      %p207 = scmp.eq.s32.totalorder %s23, 7
      %p208 = por %p206, %p207
      %p209 = scmp.ne.s32.totalorder %s201, %s204
      %p210 = scmp.eq.s32.totalorder %s23, 0
      %p211 = por %p209, %p210
      %p212 = scmp.ne.s32.totalorder %s201, %s204
      %p213 = scmp.eq.s32.totalorder %s28, 7
      %p214 = por %p212, %p213
      %p215 = scmp.ne.s32.totalorder %s204, %s205
      %p216 = scmp.eq.s32.totalorder %s28, 0
      %p217 = por %p215, %p216
      %p218 = scmp.ne.s32.totalorder %s204, %s205
      %p219 = scmp.eq.s32.totalorder %s29, 7
      %p220 = por %p218, %p219
      %p222 = scmp.ne.s32.totalorder %s205, %s221
      %p223 = scmp.eq.s32.totalorder %s29, 0
      %p224 = por %p222, %p223
      %s225 = ssub.s32 %s31, %s38
      %p226 = scmp.eq.s32.totalorder %s225, 0
      %s228 = sadd.s32 %s227, 1
      %s229 = scalar_select %p226, %s227, %s228
      %p232 = pneg %p226
      %p233 = scmp.eq.s32.totalorder %s23, 7
      %p234 = por %p232, %p233
      %p235 = scmp.ne.s32.totalorder %s227, %s230
      %p236 = scmp.eq.s32.totalorder %s23, 0
      %p237 = por %p235, %p236
      %p238 = scmp.ne.s32.totalorder %s227, %s230
      %p239 = scmp.eq.s32.totalorder %s28, 7
      %p240 = por %p238, %p239
      %p241 = scmp.ne.s32.totalorder %s230, %s231
      %p242 = scmp.eq.s32.totalorder %s28, 0
      %p243 = por %p241, %p242
      %p244 = scmp.ne.s32.totalorder %s230, %s231
      %p245 = scmp.eq.s32.totalorder %s29, 7
      %p246 = por %p244, %p245
      %p248 = scmp.ne.s32.totalorder %s231, %s247
      %p249 = scmp.eq.s32.totalorder %s29, 0
      %p250 = por %p248, %p249
      %s252 = sadd.s32 %s251, 1
      %p255 = scmp.eq.s32.totalorder %s23, 7
      %p256 = scmp.ne.s32.totalorder %s251, %s253
      %p257 = scmp.eq.s32.totalorder %s23, 0
      %p258 = por %p256, %p257
      %p259 = scmp.ne.s32.totalorder %s251, %s253
      %p260 = scmp.eq.s32.totalorder %s28, 7
      %p261 = por %p259, %p260
      %p262 = scmp.ne.s32.totalorder %s253, %s254
      %p263 = scmp.eq.s32.totalorder %s28, 0
      %p264 = por %p262, %p263
      %p265 = scmp.ne.s32.totalorder %s253, %s254
      %p266 = scmp.eq.s32.totalorder %s29, 7
      %p267 = por %p265, %p266
      %p269 = scmp.ne.s32.totalorder %s254, %s268
      %p270 = scmp.eq.s32.totalorder %s29, 0
      %p271 = por %p269, %p270
      %s272 = ssub.s32 %s30, %s42
      %p273 = scmp.eq.s32.totalorder %s272, 0
      %s275 = sadd.s32 %s274, 1
      %s276 = scalar_select %p273, %s274, %s275
      %p279 = pneg %p273
      %p280 = scmp.eq.s32.totalorder %s23, 7
      %p281 = por %p279, %p280
      %p282 = scmp.ne.s32.totalorder %s274, %s277
      %p283 = scmp.eq.s32.totalorder %s23, 0
      %p284 = por %p282, %p283
      %p285 = scmp.ne.s32.totalorder %s274, %s277
      %p286 = scmp.eq.s32.totalorder %s28, 7
      %p287 = por %p285, %p286
      %p288 = scmp.ne.s32.totalorder %s277, %s278
      %p289 = scmp.eq.s32.totalorder %s28, 0
      %p290 = por %p288, %p289
      %p291 = scmp.ne.s32.totalorder %s277, %s278
      %p292 = scmp.eq.s32.totalorder %s29, 7
      %p293 = por %p291, %p292
      %p295 = scmp.ne.s32.totalorder %s278, %s294
      %p296 = scmp.eq.s32.totalorder %s29, 0
      %p297 = por %p295, %p296
      %s298 = ssub.s32 %s30, %s42
      %s299 = ssub.s32 %s31, %s38
      %s300 = sor.u32 %s298, %s299
      %p301 = scmp.eq.s32.totalorder %s300, 0
      %s303 = sadd.s32 %s302, 1
      %s304 = scalar_select %p301, %s302, %s303
      %p307 = pneg %p301
      %p308 = scmp.eq.s32.totalorder %s23, 7
      %p309 = por %p307, %p308
      %p310 = scmp.ne.s32.totalorder %s302, %s305
      %p311 = scmp.eq.s32.totalorder %s23, 0
      %p312 = por %p310, %p311
      %p313 = scmp.ne.s32.totalorder %s302, %s305
      %p314 = scmp.eq.s32.totalorder %s28, 7
      %p315 = por %p313, %p314
      %p316 = scmp.ne.s32.totalorder %s305, %s306
      %p317 = scmp.eq.s32.totalorder %s28, 0
      %p318 = por %p316, %p317
      %p319 = scmp.ne.s32.totalorder %s305, %s306
      %p320 = scmp.eq.s32.totalorder %s29, 7
      %p321 = por %p319, %p320
      %p323 = scmp.ne.s32.totalorder %s306, %s322
      %p324 = scmp.eq.s32.totalorder %s29, 0
      %p325 = por %p323, %p324
      %p326 = scmp.le.s32.totalorder 1, %s23
      %p327 = scmp.lt.s32.totalorder %s23, 9
      %p328 = pnand %p326, %p327
      %p329 = pneg %p328
      // Predicated region
      $region9: #{tpu_custom_call.1} parent=5 // pred_check
        _
      $region10: #{tpu_custom_call.1} parent=5 // pred_check_branch
        %331 = sbr.rel (%p328) target = $region12
      $region11: #{tpu_custom_call.1} parent=5 // pred_region
        %s332 = ssub.s32 %s23, 1
        // Predicated region
        $region13: #{tpu_custom_call.1} parent=11 // pred_check
          %p333 = pneg %p264
        $region14: #{tpu_custom_call.1} parent=11 // pred_check_branch
          %335 = sbr.rel (%p333) target = $region16
        $region15: #{tpu_custom_call.1} parent=11 // pred_region
          _
        $region16: #{tpu_custom_call.1} parent=11 // pred_fallthru
          _
      $region12: #{tpu_custom_call.1} parent=5 // pred_fallthru
        _
      %p336 = scmp.lt.s32.totalorder %s23, 8
      // Predicated region
      $region17: #{tpu_custom_call.1} parent=5 // pred_check
        %p337 = pneg %p336
      $region18: #{tpu_custom_call.1} parent=5 // pred_check_branch
        %339 = sbr.rel (%p337) target = $region20
      $region19: #{tpu_custom_call.1} parent=5 // pred_region
        // Predicated region
        $region21: #{tpu_custom_call.1} parent=19 // pred_check
          %p340 = pneg %p55
        $region22: #{tpu_custom_call.1} parent=19 // pred_check_branch
          %342 = sbr.rel (%p340) target = $region24
        $region23: #{tpu_custom_call.1} parent=19 // pred_region
          %p343 = scmp.lt.s32.totalorder %s30, 1
          %s344 = scalar_select %p343, %s30, 1
          %s345 = smul.addr %s344, 8
          %s346 = scalar_lea.vmem %s0, %s345
        $region24: #{tpu_custom_call.1} parent=19 // pred_fallthru
          _
        // Predicated region
        $region25: #{tpu_custom_call.1} parent=19 // pred_check
          %p347 = pneg %p81
        $region26: #{tpu_custom_call.1} parent=19 // pred_check_branch
          %349 = sbr.rel (%p347) target = $region28
        $region27: #{tpu_custom_call.1} parent=19 // pred_region
          %p350 = scmp.lt.s32.totalorder %s31, 3
          %s351 = scalar_select %p350, %s31, 3
          %s352 = smul.addr %s351, 4
          %s353 = smul.addr %s352, 8
          %s354 = scalar_lea.vmem %s1, %s353
        $region28: #{tpu_custom_call.1} parent=19 // pred_fallthru
          _
        // Predicated region
        $region29: #{tpu_custom_call.1} parent=19 // pred_check
          %p355 = pneg %p107
        $region30: #{tpu_custom_call.1} parent=19 // pred_check_branch
          %357 = sbr.rel (%p355) target = $region32
        $region31: #{tpu_custom_call.1} parent=19 // pred_region
          %p358 = scmp.lt.s32.totalorder %s31, 3
          %s359 = scalar_select %p358, %s31, 3
          %s360 = smul.addr %s359, 4
          %s361 = smul.addr %s360, 8
          %s362 = scalar_lea.vmem %s2, %s361
        $region32: #{tpu_custom_call.1} parent=19 // pred_fallthru
          _
        // Predicated region
        $region33: #{tpu_custom_call.1} parent=19 // pred_check
          %p363 = pneg %p133
        $region34: #{tpu_custom_call.1} parent=19 // pred_check_branch
          %365 = sbr.rel (%p363) target = $region36
        $region35: #{tpu_custom_call.1} parent=19 // pred_region
          %p366 = scmp.lt.s32.totalorder %s31, 3
          %s367 = scalar_select %p366, %s31, 3
          %s368 = smul.addr %s367, 4
          %s369 = smul.addr %s368, 8
          %s370 = scalar_lea.vmem %s3, %s369
        $region36: #{tpu_custom_call.1} parent=19 // pred_fallthru
          _
        // Predicated region
        $region37: #{tpu_custom_call.1} parent=19 // pred_check
          %p371 = pneg %p159
        $region38: #{tpu_custom_call.1} parent=19 // pred_check_branch
          %373 = sbr.rel (%p371) target = $region40
        $region39: #{tpu_custom_call.1} parent=19 // pred_region
          %p374 = scmp.lt.s32.totalorder %s31, 3
          %s375 = scalar_select %p374, %s31, 3
          %s376 = scalar_lea.vmem %s4, %s375
        $region40: #{tpu_custom_call.1} parent=19 // pred_fallthru
          _
        // Predicated region
        $region41: #{tpu_custom_call.1} parent=19 // pred_check
          %p377 = pneg %p185
        $region42: #{tpu_custom_call.1} parent=19 // pred_check_branch
          %379 = sbr.rel (%p377) target = $region44
        $region43: #{tpu_custom_call.1} parent=19 // pred_region
          %p380 = scmp.lt.s32.totalorder %s31, 3
          %s381 = scalar_select %p380, %s31, 3
          %s382 = scalar_lea.vmem %s5, %s381
        $region44: #{tpu_custom_call.1} parent=19 // pred_fallthru
          _
        // Predicated region
        $region45: #{tpu_custom_call.1} parent=19 // pred_check
          %p383 = pneg %p211
        $region46: #{tpu_custom_call.1} parent=19 // pred_check_branch
          %385 = sbr.rel (%p383) target = $region48
        $region47: #{tpu_custom_call.1} parent=19 // pred_region
          %p386 = scmp.lt.s32.totalorder %s31, 3
          %s387 = scalar_select %p386, %s31, 3
          %s388 = scalar_lea.vmem %s6, %s387
        $region48: #{tpu_custom_call.1} parent=19 // pred_fallthru
          _
        // Predicated region
        $region49: #{tpu_custom_call.1} parent=19 // pred_check
          %p389 = pneg %p237
        $region50: #{tpu_custom_call.1} parent=19 // pred_check_branch
          %391 = sbr.rel (%p389) target = $region52
        $region51: #{tpu_custom_call.1} parent=19 // pred_region
          %p392 = scmp.lt.s32.totalorder %s31, 3
          %s393 = scalar_select %p392, %s31, 3
          %s394 = smul.addr %s393, 2
          %s395 = smul.addr %s394, 8
          %s396 = scalar_lea.vmem %s7, %s395
        $region52: #{tpu_custom_call.1} parent=19 // pred_fallthru
          _
      $region20: #{tpu_custom_call.1} parent=5 // pred_fallthru
        _
      %p397 = scmp.le.s32.totalorder 1, %s23
      %p398 = scmp.lt.s32.totalorder %s23, 9
      %p399 = pnand %p397, %p398
      %p400 = pneg %p399
      // Predicated region
      $region53: #{tpu_custom_call.1} parent=5 // pred_check
        _
      $region54: #{tpu_custom_call.1} parent=5 // pred_check_branch
        %402 = sbr.rel (%p399) target = $region56
      $region55: #{tpu_custom_call.1} parent=5 // pred_region
        %s403 = ssub.s32 %s23, 1
        %p404 = scmp.lt.s32.totalorder %s32, 1
        %s405 = scalar_select %p404, %s32, 1
        %s406 = smul.addr %s405, 8
        %s407 = scalar_lea.vmem %s0, %s406
        %p408 = pneg %p61
        %p409 = pneg %p58
        %p410 = scmp.lt.s32.totalorder %s33, 3
        %s411 = scalar_select %p410, %s33, 3
        %s412 = smul.addr %s411, 4
        %s413 = smul.addr %s412, 8
        %s414 = scalar_lea.vmem %s1, %s413
        %p415 = pneg %p87
        %p416 = pneg %p84
        %p417 = scmp.lt.s32.totalorder %s33, 3
        %s418 = scalar_select %p417, %s33, 3
        %s419 = smul.addr %s418, 4
        %s420 = smul.addr %s419, 8
        %s421 = scalar_lea.vmem %s2, %s420
        %p422 = pneg %p113
        %p423 = pneg %p110
        %p424 = scmp.lt.s32.totalorder %s33, 3
        %s425 = scalar_select %p424, %s33, 3
        %s426 = smul.addr %s425, 4
        %s427 = smul.addr %s426, 8
        %s428 = scalar_lea.vmem %s3, %s427
        %p429 = pneg %p139
        %p430 = pneg %p136
        %p431 = scmp.lt.s32.totalorder %s33, 3
        %s432 = scalar_select %p431, %s33, 3
        %s433 = scalar_lea.vmem %s4, %s432
        %p434 = pneg %p165
        %p435 = pneg %p162
        %p436 = scmp.lt.s32.totalorder %s33, 3
        %s437 = scalar_select %p436, %s33, 3
        %s438 = scalar_lea.vmem %s5, %s437
        %p439 = pneg %p191
        %p440 = pneg %p188
        %p441 = scmp.lt.s32.totalorder %s33, 3
        %s442 = scalar_select %p441, %s33, 3
        %s443 = scalar_lea.vmem %s6, %s442
        %p444 = pneg %p217
        %p445 = pneg %p214
        %p446 = scmp.lt.s32.totalorder %s33, 3
        %s447 = scalar_select %p446, %s33, 3
        %s448 = smul.addr %s447, 2
        %s449 = smul.addr %s448, 8
        %s450 = scalar_lea.vmem %s7, %s449
        %p451 = pneg %p243
        %p452 = pneg %p240
        %p453 = pneg %p264
        %p454 = pneg %p261
        %p455 = pneg %p290
        %p456 = pneg %p287
        %s457 = sand.u32 %s277, 1
        %s458 = scalar_lea.sflag [#allocation3], %s457
        %s459 = sand.u32 %s277, 1
        %s460 = smul.addr %s459, 8
        %s461 = scalar_lea.vmem [#allocation2], %s460
        %p462 = pneg %p318
        %p463 = pneg %p315
        %s464 = sand.u32 %s305, 1
        %s465 = scalar_lea.sflag [#allocation5], %s464
        %s466 = sand.u32 %s305, 1
        %s467 = smul.addr %s466, 8
        %s468 = scalar_lea.vmem [#allocation4], %s467
        %p469 = scmp.lt.s32.totalorder %s32, 1
        %s470 = scalar_select %p469, %s32, 1
        %s471 = smul.addr %s470, 8
        %s472 = scalar_lea.vmem %s0, %s471
        %p473 = scmp.lt.s32.totalorder %s33, 3
        %s474 = scalar_select %p473, %s33, 3
        %s475 = smul.addr %s474, 4
        %s476 = smul.addr %s475, 8
        %s477 = scalar_lea.vmem %s1, %s476
        %p478 = scmp.lt.s32.totalorder %s33, 3
        %s479 = scalar_select %p478, %s33, 3
        %s480 = smul.addr %s479, 4
        %s481 = smul.addr %s480, 8
        %s482 = scalar_lea.vmem %s2, %s481
        %p483 = scmp.lt.s32.totalorder %s33, 3
        %s484 = scalar_select %p483, %s33, 3
        %s485 = smul.addr %s484, 4
        %s486 = smul.addr %s485, 8
        %s487 = scalar_lea.vmem %s3, %s486
        %p488 = scmp.lt.s32.totalorder %s33, 3
        %s489 = scalar_select %p488, %s33, 3
        %s490 = scalar_lea.vmem %s4, %s489
        %p491 = scmp.lt.s32.totalorder %s33, 3
        %s492 = scalar_select %p491, %s33, 3
        %s493 = scalar_lea.vmem %s5, %s492
        %p494 = scmp.lt.s32.totalorder %s33, 3
        %s495 = scalar_select %p494, %s33, 3
        %s496 = scalar_lea.vmem %s6, %s495
        %p497 = scmp.lt.s32.totalorder %s33, 3
        %s498 = scalar_select %p497, %s33, 3
        %s499 = smul.addr %s498, 2
        %s500 = smul.addr %s499, 8
        %s501 = scalar_lea.vmem %s7, %s500
        %v502 = vld [vmem:[%s472] sm:$0xff]
        %v503 = vld [vmem:[%s477] sm:$0xff]
        %v504 = vld [vmem:[%s477 + $0x8] sm:$0xff]
        %v505 = vld [vmem:[%s477 + $0x10] sm:$0xff]
        %v506 = vld [vmem:[%s477 + $0x18] sm:$0xff]
        %v507 = vld [vmem:[%s490] sm:$0x1]
        %v509 = vlaneseq
        %v510 = vshrl.u32 %v509, 7
        %v511 = vsub.s32 0, %v510
        %v512 = vrot.slane %v507, %v511
        %vm514 = vcmask 261120
        %v516 = vsel %vm514, %v502, 0
        %518 = vmatprep.subr.mxu0 0.0
        %519 = vmatpush1.msra.mxu0 %v503
        %520 = vmatprep.subr.mxu0 0.0
        %521 = vmatpush1.msra.mxu0 %v504
        %522 = vmatprep.subr.mxu0 0.0
        %523 = vmatpush1.msra.mxu0 %v505
        %524 = vmatprep.subr.mxu0 0.0
        %525 = vmatpush1.msra.mxu0 %v506
        %526 = vmatprep.subr.mxu0 0.0
        %527 = vmatpush1.msra.mxu0 0.0
        %528 = vmatprep.subr.mxu0 0.0
        %529 = vmatpush1.msra.mxu0 0.0
        %530 = vmatprep.subr.mxu0 0.0
        %531 = vmatpush1.msra.mxu0 0.0
        %532 = vmatprep.subr.mxu0 0.0
        %533 = vmatpush1.msra.mxu0 0.0
        %534 = vmatprep.subr.mxu0 0.0
        %535 = vmatpush1.msra.mxu0 0.0
        %536 = vmatprep.subr.mxu0 0.0
        %537 = vmatpush1.msra.mxu0 0.0
        %538 = vmatprep.subr.mxu0 0.0
        %539 = vmatpush1.msra.mxu0 0.0
        %540 = vmatprep.subr.mxu0 0.0
        %541 = vmatpush1.msra.mxu0 0.0
        %542 = vmatprep.subr.mxu0 0.0
        %543 = vmatpush1.msra.mxu0 0.0
        %544 = vmatprep.subr.mxu0 0.0
        %545 = vmatpush1.msra.mxu0 0.0
        %546 = vmatprep.subr.mxu0 0.0
        %547 = vmatpush1.msra.mxu0 0.0
        %548 = vmatprep.subr.mxu0 0.0
        %549 = vmatpush1.msra.mxu0 0.0
        %550 = vmatprep.subr.mxu0 0.0
        %551 = vmatpush1.msra.mxu0 0.0
        %552 = vmatprep.subr.mxu0 0.0
        %553 = vmatpush1.msra.mxu0 0.0
        %554 = vmatprep.subr.mxu0 0.0
        %555 = vmatpush1.msra.mxu0 0.0
        %556 = vmatprep.subr.mxu0 0.0
        %557 = vmatpush1.msra.mxu0 0.0
        %558 = vmatprep.subr.mxu0 0.0
        %559 = vmatpush1.msra.mxu0 0.0
        %560 = vmatprep.subr.mxu0 0.0
        %561 = vmatpush1.msra.mxu0 0.0
        %562 = vmatprep.subr.mxu0 0.0
        %563 = vmatpush1.msra.mxu0 0.0
        %564 = vmatprep.subr.mxu0 0.0
        %565 = vmatpush1.msra.mxu0 0.0
        %566 = vmatprep.subr.mxu0 0.0
        %567 = vmatpush1.msra.mxu0 0.0
        %568 = vmatprep.subr.mxu0 0.0
        %569 = vmatpush1.msra.mxu0 0.0
        %570 = vmatprep.subr.mxu0 0.0
        %571 = vmatpush1.msra.mxu0 0.0
        %572 = vmatprep.subr.mxu0 0.0
        %573 = vmatpush1.msra.mxu0 0.0
        %574 = vmatprep.subr.mxu0 0.0
        %575 = vmatpush1.msra.mxu0 0.0
        %576 = vmatprep.subr.mxu0 0.0
        %577 = vmatpush1.msra.mxu0 0.0
        %578 = vmatprep.subr.mxu0 0.0
        %579 = vmatpush1.msra.mxu0 0.0
        %580 = vmatprep.subr.mxu0 0.0
        %581 = vmatpush1.msra.mxu0 0.0
        %582 = vmatprep.mubr.f32.mxu0 0.0
        %583 = vmatmul.mubr.f32.gmra.mrb[0].mxu0 %v516
        %v584 = vpop.f32.mrb[0].mxu0
        %v585 = vadd.f32 %v512, %v584
        %v586 = vpop.f32.mrb[0].mxu0
        %587 = vdwg.mxu0
        %v588 = vld [vmem:[%s482] sm:$0xff]
        %v589 = vld [vmem:[%s482 + $0x8] sm:$0xff]
        %v590 = vld [vmem:[%s482 + $0x10] sm:$0xff]
        %v591 = vld [vmem:[%s482 + $0x18] sm:$0xff]
        %v592 = vld [vmem:[%s493] sm:$0x1]
        %v594 = vlaneseq
        %v595 = vshrl.u32 %v594, 7
        %v596 = vsub.s32 0, %v595
        %v597 = vrot.slane %v592, %v596
        %599 = vmatprep.subr.mxu0 0.0
        %600 = vmatpush1.msra.mxu0 %v588
        %601 = vmatprep.subr.mxu0 0.0
        %602 = vmatpush1.msra.mxu0 %v589
        %603 = vmatprep.subr.mxu0 0.0
        %604 = vmatpush1.msra.mxu0 %v590
        %605 = vmatprep.subr.mxu0 0.0
        %606 = vmatpush1.msra.mxu0 %v591
        %607 = vmatprep.subr.mxu0 0.0
        %608 = vmatpush1.msra.mxu0 0.0
        %609 = vmatprep.subr.mxu0 0.0
        %610 = vmatpush1.msra.mxu0 0.0
        %611 = vmatprep.subr.mxu0 0.0
        %612 = vmatpush1.msra.mxu0 0.0
        %613 = vmatprep.subr.mxu0 0.0
        %614 = vmatpush1.msra.mxu0 0.0
        %615 = vmatprep.subr.mxu0 0.0
        %616 = vmatpush1.msra.mxu0 0.0
        %617 = vmatprep.subr.mxu0 0.0
        %618 = vmatpush1.msra.mxu0 0.0
        %619 = vmatprep.subr.mxu0 0.0
        %620 = vmatpush1.msra.mxu0 0.0
        %621 = vmatprep.subr.mxu0 0.0
        %622 = vmatpush1.msra.mxu0 0.0
        %623 = vmatprep.subr.mxu0 0.0
        %624 = vmatpush1.msra.mxu0 0.0
        %625 = vmatprep.subr.mxu0 0.0
        %626 = vmatpush1.msra.mxu0 0.0
        %627 = vmatprep.subr.mxu0 0.0
        %628 = vmatpush1.msra.mxu0 0.0
        %629 = vmatprep.subr.mxu0 0.0
        %630 = vmatpush1.msra.mxu0 0.0
        %631 = vmatprep.subr.mxu0 0.0
        %632 = vmatpush1.msra.mxu0 0.0
        %633 = vmatprep.subr.mxu0 0.0
        %634 = vmatpush1.msra.mxu0 0.0
        %635 = vmatprep.subr.mxu0 0.0
        %636 = vmatpush1.msra.mxu0 0.0
        %637 = vmatprep.subr.mxu0 0.0
        %638 = vmatpush1.msra.mxu0 0.0
        %639 = vmatprep.subr.mxu0 0.0
        %640 = vmatpush1.msra.mxu0 0.0
        %641 = vmatprep.subr.mxu0 0.0
        %642 = vmatpush1.msra.mxu0 0.0
        %643 = vmatprep.subr.mxu0 0.0
        %644 = vmatpush1.msra.mxu0 0.0
        %645 = vmatprep.subr.mxu0 0.0
        %646 = vmatpush1.msra.mxu0 0.0
        %647 = vmatprep.subr.mxu0 0.0
        %648 = vmatpush1.msra.mxu0 0.0
        %649 = vmatprep.subr.mxu0 0.0
        %650 = vmatpush1.msra.mxu0 0.0
        %651 = vmatprep.subr.mxu0 0.0
        %652 = vmatpush1.msra.mxu0 0.0
        %653 = vmatprep.subr.mxu0 0.0
        %654 = vmatpush1.msra.mxu0 0.0
        %655 = vmatprep.subr.mxu0 0.0
        %656 = vmatpush1.msra.mxu0 0.0
        %657 = vmatprep.subr.mxu0 0.0
        %658 = vmatpush1.msra.mxu0 0.0
        %659 = vmatprep.subr.mxu0 0.0
        %660 = vmatpush1.msra.mxu0 0.0
        %661 = vmatprep.subr.mxu0 0.0
        %662 = vmatpush1.msra.mxu0 0.0
        %663 = vmatprep.mubr.f32.mxu0 0.0
        %664 = vmatmul.mubr.f32.gmra.mrb[0].mxu0 %v516
        %v665 = vpop.f32.mrb[0].mxu0
        %v666 = vadd.f32 %v597, %v665
        %v667 = vpop.f32.mrb[0].mxu0
        %668 = vdwg.mxu0
        %v669 = vld [vmem:[%s487] sm:$0xff]
        %v670 = vld [vmem:[%s487 + $0x8] sm:$0xff]
        %v671 = vld [vmem:[%s487 + $0x10] sm:$0xff]
        %v672 = vld [vmem:[%s487 + $0x18] sm:$0xff]
        %v673 = vld [vmem:[%s496] sm:$0x1]
        %v675 = vlaneseq
        %v676 = vshrl.u32 %v675, 7
        %v677 = vsub.s32 0, %v676
        %v678 = vrot.slane %v673, %v677
        %680 = vmatprep.subr.mxu0 0.0
        %681 = vmatpush1.msra.mxu0 %v669
        %682 = vmatprep.subr.mxu0 0.0
        %683 = vmatpush1.msra.mxu0 %v670
        %684 = vmatprep.subr.mxu0 0.0
        %685 = vmatpush1.msra.mxu0 %v671
        %686 = vmatprep.subr.mxu0 0.0
        %687 = vmatpush1.msra.mxu0 %v672
        %688 = vmatprep.subr.mxu0 0.0
        %689 = vmatpush1.msra.mxu0 0.0
        %690 = vmatprep.subr.mxu0 0.0
        %691 = vmatpush1.msra.mxu0 0.0
        %692 = vmatprep.subr.mxu0 0.0
        %693 = vmatpush1.msra.mxu0 0.0
        %694 = vmatprep.subr.mxu0 0.0
        %695 = vmatpush1.msra.mxu0 0.0
        %696 = vmatprep.subr.mxu0 0.0
        %697 = vmatpush1.msra.mxu0 0.0
        %698 = vmatprep.subr.mxu0 0.0
        %699 = vmatpush1.msra.mxu0 0.0
        %700 = vmatprep.subr.mxu0 0.0
        %701 = vmatpush1.msra.mxu0 0.0
        %702 = vmatprep.subr.mxu0 0.0
        %703 = vmatpush1.msra.mxu0 0.0
        %704 = vmatprep.subr.mxu0 0.0
        %705 = vmatpush1.msra.mxu0 0.0
        %706 = vmatprep.subr.mxu0 0.0
        %707 = vmatpush1.msra.mxu0 0.0
        %708 = vmatprep.subr.mxu0 0.0
        %709 = vmatpush1.msra.mxu0 0.0
        %710 = vmatprep.subr.mxu0 0.0
        %711 = vmatpush1.msra.mxu0 0.0
        %712 = vmatprep.subr.mxu0 0.0
        %713 = vmatpush1.msra.mxu0 0.0
        %714 = vmatprep.subr.mxu0 0.0
        %715 = vmatpush1.msra.mxu0 0.0
        %716 = vmatprep.subr.mxu0 0.0
        %717 = vmatpush1.msra.mxu0 0.0
        %718 = vmatprep.subr.mxu0 0.0
        %719 = vmatpush1.msra.mxu0 0.0
        %720 = vmatprep.subr.mxu0 0.0
        %721 = vmatpush1.msra.mxu0 0.0
        %722 = vmatprep.subr.mxu0 0.0
        %723 = vmatpush1.msra.mxu0 0.0
        %724 = vmatprep.subr.mxu0 0.0
        %725 = vmatpush1.msra.mxu0 0.0
        %726 = vmatprep.subr.mxu0 0.0
        %727 = vmatpush1.msra.mxu0 0.0
        %728 = vmatprep.subr.mxu0 0.0
        %729 = vmatpush1.msra.mxu0 0.0
        %730 = vmatprep.subr.mxu0 0.0
        %731 = vmatpush1.msra.mxu0 0.0
        %732 = vmatprep.subr.mxu0 0.0
        %733 = vmatpush1.msra.mxu0 0.0
        %734 = vmatprep.subr.mxu0 0.0
        %735 = vmatpush1.msra.mxu0 0.0
        %736 = vmatprep.subr.mxu0 0.0
        %737 = vmatpush1.msra.mxu0 0.0
        %738 = vmatprep.subr.mxu0 0.0
        %739 = vmatpush1.msra.mxu0 0.0
        %740 = vmatprep.subr.mxu0 0.0
        %741 = vmatpush1.msra.mxu0 0.0
        %742 = vmatprep.subr.mxu0 0.0
        %743 = vmatpush1.msra.mxu0 0.0
        %744 = vmatprep.mubr.f32.mxu0 0.0
        %745 = vmatmul.mubr.f32.gmra.mrb[0].mxu0 %v516
        %v746 = vpop.f32.mrb[0].mxu0
        %v747 = vadd.f32 %v678, %v746
        %v748 = vpop.f32.mrb[0].mxu0
        %749 = vdwg.mxu0
        %vm750 = vcmask 130048
        %v752 = vsel %vm750, %v585, 0
        %v755 = vsel %vm750, %v666, 0
        %757 = vmatprep.subr.mxu0 0.0
        %758 = vmatpush1.xpose.msra.mxu0 %v755
        %759 = vmatprep.subr.mxu0 0.0
        %760 = vmatpush1.xpose.msra.mxu0 0.0
        %761 = vmatprep.subr.mxu0 0.0
        %762 = vmatpush1.xpose.msra.mxu0 0.0
        %763 = vmatprep.subr.mxu0 0.0
        %764 = vmatpush1.xpose.msra.mxu0 0.0
        %765 = vmatprep.subr.mxu0 0.0
        %766 = vmatpush1.xpose.msra.mxu0 0.0
        %767 = vmatprep.subr.mxu0 0.0
        %768 = vmatpush1.xpose.msra.mxu0 0.0
        %769 = vmatprep.subr.mxu0 0.0
        %770 = vmatpush1.xpose.msra.mxu0 0.0
        %771 = vmatprep.subr.mxu0 0.0
        %772 = vmatpush1.xpose.msra.mxu0 0.0
        %773 = vmatprep.subr.mxu0 0.0
        %774 = vmatpush1.xpose.msra.mxu0 0.0
        %775 = vmatprep.subr.mxu0 0.0
        %776 = vmatpush1.xpose.msra.mxu0 0.0
        %777 = vmatprep.subr.mxu0 0.0
        %778 = vmatpush1.xpose.msra.mxu0 0.0
        %779 = vmatprep.subr.mxu0 0.0
        %780 = vmatpush1.xpose.msra.mxu0 0.0
        %781 = vmatprep.subr.mxu0 0.0
        %782 = vmatpush1.xpose.msra.mxu0 0.0
        %783 = vmatprep.subr.mxu0 0.0
        %784 = vmatpush1.xpose.msra.mxu0 0.0
        %785 = vmatprep.subr.mxu0 0.0
        %786 = vmatpush1.xpose.msra.mxu0 0.0
        %787 = vmatprep.subr.mxu0 0.0
        %788 = vmatpush1.xpose.msra.mxu0 0.0
        %789 = vmatprep.subr.mxu0 0.0
        %790 = vmatpush1.xpose.msra.mxu0 0.0
        %791 = vmatprep.subr.mxu0 0.0
        %792 = vmatpush1.xpose.msra.mxu0 0.0
        %793 = vmatprep.subr.mxu0 0.0
        %794 = vmatpush1.xpose.msra.mxu0 0.0
        %795 = vmatprep.subr.mxu0 0.0
        %796 = vmatpush1.xpose.msra.mxu0 0.0
        %797 = vmatprep.subr.mxu0 0.0
        %798 = vmatpush1.xpose.msra.mxu0 0.0
        %799 = vmatprep.subr.mxu0 0.0
        %800 = vmatpush1.xpose.msra.mxu0 0.0
        %801 = vmatprep.subr.mxu0 0.0
        %802 = vmatpush1.xpose.msra.mxu0 0.0
        %803 = vmatprep.subr.mxu0 0.0
        %804 = vmatpush1.xpose.msra.mxu0 0.0
        %805 = vmatprep.subr.mxu0 0.0
        %806 = vmatpush1.xpose.msra.mxu0 0.0
        %807 = vmatprep.subr.mxu0 0.0
        %808 = vmatpush1.xpose.msra.mxu0 0.0
        %809 = vmatprep.subr.mxu0 0.0
        %810 = vmatpush1.xpose.msra.mxu0 0.0
        %811 = vmatprep.subr.mxu0 0.0
        %812 = vmatpush1.xpose.msra.mxu0 0.0
        %813 = vmatprep.subr.mxu0 0.0
        %814 = vmatpush1.xpose.msra.mxu0 0.0
        %815 = vmatprep.subr.mxu0 0.0
        %816 = vmatpush1.xpose.msra.mxu0 0.0
        %817 = vmatprep.subr.mxu0 0.0
        %818 = vmatpush1.xpose.msra.mxu0 0.0
        %819 = vmatprep.subr.mxu0 0.0
        %820 = vmatpush1.xpose.msra.mxu0 0.0
        %821 = vmatprep.mubr.f32.mxu0 0.0
        %822 = vmatmul.mubr.f32.gmra.mrb[0].mxu0 %v752
        %v823 = vpop.f32.mrb[0].mxu0
        %v824 = vadd.f32 0.0, %v823
        %v825 = vpop.f32.mrb[0].mxu0
        %826 = vdwg.mxu0
        %v827 = vmul.f32 %v824, 0.25
        %vm828 = vcmask 64512
        %v829 = vsel %vm828, %v827, -inf
        %830 = vmax.xlane.f32.xlu0 %v829
        %v831 = vpop.xlane.xlu0 %830
        %v832 = vsub.f32 %v827, %v831
        %v833 = vmul.f32 %v832, 1.442695
        %v834 = vpow.pop %v833
        %v835 = vsel %vm828, %v834, 0.0
        %836 = vadd.xlane.f32.xlu0 %v835
        %v837 = vpop.xlane.xlu0 %836
        %v838 = vrcp.pop %v837
        %v839 = vmul.f32 %v834, %v838
        %840 = vst.msk [vmem:[%s468] sm:$0xff] %vm828, %v839
        %v842 = vsel %vm828, %v839, 0
        %844 = vmatprep.subr.mxu0 0.0
        %845 = vmatpush1.msra.mxu0 %v747
        %846 = vmatprep.subr.mxu0 0.0
        %847 = vmatpush1.msra.mxu0 0.0
        %848 = vmatprep.subr.mxu0 0.0
        %849 = vmatpush1.msra.mxu0 0.0
        %850 = vmatprep.subr.mxu0 0.0
        %851 = vmatpush1.msra.mxu0 0.0
        %852 = vmatprep.subr.mxu0 0.0
        %853 = vmatpush1.msra.mxu0 0.0
        %854 = vmatprep.subr.mxu0 0.0
        %855 = vmatpush1.msra.mxu0 0.0
        %856 = vmatprep.subr.mxu0 0.0
        %857 = vmatpush1.msra.mxu0 0.0
        %858 = vmatprep.subr.mxu0 0.0
        %859 = vmatpush1.msra.mxu0 0.0
        %860 = vmatprep.subr.mxu0 0.0
        %861 = vmatpush1.msra.mxu0 0.0
        %862 = vmatprep.subr.mxu0 0.0
        %863 = vmatpush1.msra.mxu0 0.0
        %864 = vmatprep.subr.mxu0 0.0
        %865 = vmatpush1.msra.mxu0 0.0
        %866 = vmatprep.subr.mxu0 0.0
        %867 = vmatpush1.msra.mxu0 0.0
        %868 = vmatprep.subr.mxu0 0.0
        %869 = vmatpush1.msra.mxu0 0.0
        %870 = vmatprep.subr.mxu0 0.0
        %871 = vmatpush1.msra.mxu0 0.0
        %872 = vmatprep.subr.mxu0 0.0
        %873 = vmatpush1.msra.mxu0 0.0
        %874 = vmatprep.subr.mxu0 0.0
        %875 = vmatpush1.msra.mxu0 0.0
        %876 = vmatprep.subr.mxu0 0.0
        %877 = vmatpush1.msra.mxu0 0.0
        %878 = vmatprep.subr.mxu0 0.0
        %879 = vmatpush1.msra.mxu0 0.0
        %880 = vmatprep.subr.mxu0 0.0
        %881 = vmatpush1.msra.mxu0 0.0
        %882 = vmatprep.subr.mxu0 0.0
        %883 = vmatpush1.msra.mxu0 0.0
        %884 = vmatprep.subr.mxu0 0.0
        %885 = vmatpush1.msra.mxu0 0.0
        %886 = vmatprep.subr.mxu0 0.0
        %887 = vmatpush1.msra.mxu0 0.0
        %888 = vmatprep.subr.mxu0 0.0
        %889 = vmatpush1.msra.mxu0 0.0
        %890 = vmatprep.subr.mxu0 0.0
        %891 = vmatpush1.msra.mxu0 0.0
        %892 = vmatprep.subr.mxu0 0.0
        %893 = vmatpush1.msra.mxu0 0.0
        %894 = vmatprep.subr.mxu0 0.0
        %895 = vmatpush1.msra.mxu0 0.0
        %896 = vmatprep.subr.mxu0 0.0
        %897 = vmatpush1.msra.mxu0 0.0
        %898 = vmatprep.subr.mxu0 0.0
        %899 = vmatpush1.msra.mxu0 0.0
        %900 = vmatprep.subr.mxu0 0.0
        %901 = vmatpush1.msra.mxu0 0.0
        %902 = vmatprep.subr.mxu0 0.0
        %903 = vmatpush1.msra.mxu0 0.0
        %904 = vmatprep.subr.mxu0 0.0
        %905 = vmatpush1.msra.mxu0 0.0
        %906 = vmatprep.subr.mxu0 0.0
        %907 = vmatpush1.msra.mxu0 0.0
        %908 = vmatprep.mubr.f32.mxu0 0.0
        %909 = vmatmul.mubr.f32.gmra.mrb[0].mxu0 %v842
        %v910 = vpop.f32.mrb[0].mxu0
        %v911 = vadd.f32 0.0, %v910
        %v912 = vpop.f32.mrb[0].mxu0
        %913 = vdwg.mxu0
        %v914 = vld [vmem:[%s501] sm:$0xff]
        %v915 = vld [vmem:[%s501 + $0x8] sm:$0xff]
        %v917 = vsel %vm750, %v911, 0
        %919 = vmatprep.subr.mxu0 0.0
        %920 = vmatpush1.msra.mxu0 %v914
        %921 = vmatprep.subr.mxu0 0.0
        %922 = vmatpush1.msra.mxu0 %v915
        %923 = vmatprep.subr.mxu0 0.0
        %924 = vmatpush1.msra.mxu0 0.0
        %925 = vmatprep.subr.mxu0 0.0
        %926 = vmatpush1.msra.mxu0 0.0
        %927 = vmatprep.subr.mxu0 0.0
        %928 = vmatpush1.msra.mxu0 0.0
        %929 = vmatprep.subr.mxu0 0.0
        %930 = vmatpush1.msra.mxu0 0.0
        %931 = vmatprep.subr.mxu0 0.0
        %932 = vmatpush1.msra.mxu0 0.0
        %933 = vmatprep.subr.mxu0 0.0
        %934 = vmatpush1.msra.mxu0 0.0
        %935 = vmatprep.subr.mxu0 0.0
        %936 = vmatpush1.msra.mxu0 0.0
        %937 = vmatprep.subr.mxu0 0.0
        %938 = vmatpush1.msra.mxu0 0.0
        %939 = vmatprep.subr.mxu0 0.0
        %940 = vmatpush1.msra.mxu0 0.0
        %941 = vmatprep.subr.mxu0 0.0
        %942 = vmatpush1.msra.mxu0 0.0
        %943 = vmatprep.subr.mxu0 0.0
        %944 = vmatpush1.msra.mxu0 0.0
        %945 = vmatprep.subr.mxu0 0.0
        %946 = vmatpush1.msra.mxu0 0.0
        %947 = vmatprep.subr.mxu0 0.0
        %948 = vmatpush1.msra.mxu0 0.0
        %949 = vmatprep.subr.mxu0 0.0
        %950 = vmatpush1.msra.mxu0 0.0
        %951 = vmatprep.subr.mxu0 0.0
        %952 = vmatpush1.msra.mxu0 0.0
        %953 = vmatprep.subr.mxu0 0.0
        %954 = vmatpush1.msra.mxu0 0.0
        %955 = vmatprep.subr.mxu0 0.0
        %956 = vmatpush1.msra.mxu0 0.0
        %957 = vmatprep.subr.mxu0 0.0
        %958 = vmatpush1.msra.mxu0 0.0
        %959 = vmatprep.subr.mxu0 0.0
        %960 = vmatpush1.msra.mxu0 0.0
        %961 = vmatprep.subr.mxu0 0.0
        %962 = vmatpush1.msra.mxu0 0.0
        %963 = vmatprep.subr.mxu0 0.0
        %964 = vmatpush1.msra.mxu0 0.0
        %965 = vmatprep.subr.mxu0 0.0
        %966 = vmatpush1.msra.mxu0 0.0
        %967 = vmatprep.subr.mxu0 0.0
        %968 = vmatpush1.msra.mxu0 0.0
        %969 = vmatprep.subr.mxu0 0.0
        %970 = vmatpush1.msra.mxu0 0.0
        %971 = vmatprep.subr.mxu0 0.0
        %972 = vmatpush1.msra.mxu0 0.0
        %973 = vmatprep.subr.mxu0 0.0
        %974 = vmatpush1.msra.mxu0 0.0
        %975 = vmatprep.subr.mxu0 0.0
        %976 = vmatpush1.msra.mxu0 0.0
        %977 = vmatprep.subr.mxu0 0.0
        %978 = vmatpush1.msra.mxu0 0.0
        %979 = vmatprep.subr.mxu0 0.0
        %980 = vmatpush1.msra.mxu0 0.0
        %981 = vmatprep.subr.mxu0 0.0
        %982 = vmatpush1.msra.mxu0 0.0
        %983 = vmatprep.mubr.f32.mxu0 0.0
        %984 = vmatmul.mubr.f32.gmra.mrb[0].mxu0 %v917
        %v985 = vpop.f32.mrb[0].mxu0
        %v986 = vadd.f32 0.0, %v985
        %v987 = vpop.f32.mrb[0].mxu0
        %988 = vdwg.mxu0
        %p989 = scmp.eq.s32.totalorder %s33, 0
        // Predicated region
        $region57: #{tpu_custom_call.1} parent=55 // pred_check
          %p990 = pneg %p989
        $region58: #{tpu_custom_call.1} parent=55 // pred_check_branch
          %992 = sbr.rel (%p990) target = $region60
        $region59: #{tpu_custom_call.1} parent=55 // pred_region
          %v993 = vld [vmem:[%s8] sm:$0x1]
          %v995 = vlaneseq
          %v996 = vshrl.u32 %v995, 7
          %v997 = vsub.s32 0, %v996
          %v998 = vrot.slane %v993, %v997
          %1000 = vst.msk [vmem:[%s461] sm:$0xff] %vm514, %v998
        $region60: #{tpu_custom_call.1} parent=55 // pred_fallthru
          _
        %v1001 = vld [vmem:[%s461] sm:$0xff]
        %v1002 = vadd.f32 %v1001, %v986
        %1003 = vst.msk [vmem:[%s461] sm:$0xff] %vm514, %v1002
        %s1004 = sand.u32 %s277, 1
        %s1005 = scalar_lea.sflag [#allocation3], %s1004
        %s1006 = sand.u32 %s277, 1
        %s1007 = smul.addr %s1006, 8
        %s1008 = scalar_lea.vmem [#allocation2], %s1007
        %s1009 = sand.u32 %s305, 1
        %s1010 = scalar_lea.sflag [#allocation5], %s1009
        %s1011 = sand.u32 %s305, 1
        %s1012 = smul.addr %s1011, 8
        %s1013 = scalar_lea.vmem [#allocation4], %s1012
        // Predicated region
        $region61: #{tpu_custom_call.1} parent=55 // pred_check
          %p1014 = pneg %p287
        $region62: #{tpu_custom_call.1} parent=55 // pred_check_branch
          %1016 = sbr.rel (%p1014) target = $region64
        $region63: #{tpu_custom_call.1} parent=55 // pred_region
          %s1018 = ssub.s32 128, 128
          %1019 = vsyncadd %s1005, %s1018
          %s1020 = smul.addr %s32, 128
          %s1021 = scalar_lea.hbm %s9, %s1020
          %s1023 = sshll.u32 %s1008, 4
          %s1024 = int_to_ptr.vmem [resolvable:$true] %s1023
          %1026 = dma.vmem_to_hbm [thread:$0]  %s1024, 128, %s1021, %s1005
        $region64: #{tpu_custom_call.1} parent=55 // pred_fallthru
          _
        // Predicated region
        $region65: #{tpu_custom_call.1} parent=55 // pred_check
          %p1027 = pneg %p315
        $region66: #{tpu_custom_call.1} parent=55 // pred_check_branch
          %1029 = sbr.rel (%p1027) target = $region68
        $region67: #{tpu_custom_call.1} parent=55 // pred_region
          %s1031 = ssub.s32 128, 128
          %1032 = vsyncadd %s1010, %s1031
          %s1033 = smul.addr %s32, 4
          %s1034 = sadd.s32 %s33, %s1033
          %s1035 = smul.addr %s1034, 128
          %s1036 = scalar_lea.hbm %s10, %s1035
          %s1038 = sshll.u32 %s1013, 4
          %s1039 = int_to_ptr.vmem [resolvable:$true] %s1038
          %1041 = dma.vmem_to_hbm [thread:$0]  %s1039, 128, %s1036, %s1010
        $region68: #{tpu_custom_call.1} parent=55 // pred_fallthru
          _
      $region56: #{tpu_custom_call.1} parent=5 // pred_fallthru
        _
      %p1042 = scmp.le.s32.totalorder 2, %s23
      // Predicated region
      $region69: #{tpu_custom_call.1} parent=5 // pred_check
        %p1043 = pneg %p1042
      $region70: #{tpu_custom_call.1} parent=5 // pred_check_branch
        %1045 = sbr.rel (%p1043) target = $region72
      $region71: #{tpu_custom_call.1} parent=5 // pred_region
        %s1046 = ssub.s32 %s23, 2
        // Predicated region
        $region73: #{tpu_custom_call.1} parent=71 // pred_check
          %p1047 = pneg %p293
        $region74: #{tpu_custom_call.1} parent=71 // pred_check_branch
          %1049 = sbr.rel (%p1047) target = $region76
        $region75: #{tpu_custom_call.1} parent=71 // pred_region
          %s1050 = sand.u32 %s278, 1
          %s1051 = scalar_lea.sflag [#allocation3], %s1050
          %s1052 = sand.u32 %s278, 1
          %s1053 = smul.addr %s1052, 8
          %s1054 = scalar_lea.vmem [#allocation2], %s1053
          %1055 = dma.done %s1051, 128
        $region76: #{tpu_custom_call.1} parent=71 // pred_fallthru
          _
        // Predicated region
        $region77: #{tpu_custom_call.1} parent=71 // pred_check
          %p1056 = pneg %p321
        $region78: #{tpu_custom_call.1} parent=71 // pred_check_branch
          %1058 = sbr.rel (%p1056) target = $region80
        $region79: #{tpu_custom_call.1} parent=71 // pred_region
          %s1059 = sand.u32 %s306, 1
          %s1060 = scalar_lea.sflag [#allocation5], %s1059
          %s1061 = sand.u32 %s306, 1
          %s1062 = smul.addr %s1061, 8
          %s1063 = scalar_lea.vmem [#allocation4], %s1062
          %1064 = dma.done %s1060, 128
        $region80: #{tpu_custom_call.1} parent=71 // pred_fallthru
          _
      $region72: #{tpu_custom_call.1} parent=5 // pred_fallthru
        _
    $region6: #{tpu_custom_call.1} parent=1 // loop_footer
      %s27 = sadd.s32 1, %s23
    $region7: #{tpu_custom_call.1} parent=1 // loop_footer_branch
      %22 = sbr.rel target = $region3
    $region8: #{tpu_custom_call.1} parent=1 // loop_exit
      _
    %1065 = vsyncpa [#allocation3], 1
    %s1066 = scalar_lea.sflag [#allocation3], 1
    %1067 = vsyncpa %s1066, 1
    %1068 = vsyncpa [#allocation5], 1
    %s1069 = scalar_lea.sflag [#allocation5], 1
    %1070 = vsyncpa %s1069, 1

</llo_original>
